<compile_context>
chip_gen: v5e
topology: v5e:2x2
jax: 0.10.0
libtpu: 0.0.40
codegen_flags: <defaults>
</compile_context>

<pallas_src>
import functools

import jax
import jax.numpy as jnp
from jax.experimental import pallas as pl
from jax.experimental.pallas import tpu as pltpu

# --- small, deterministic config (module implies these hyperparameters) ---
VOCAB_SIZE = 32      # len(chars) in the original script
BLOCK_SIZE = 16      # block_size (256 in original; small here)
N_EMBD     = 32      # n_embd (384 in original; small here)
NUM_HEADS  = 4
HEAD_SIZE  = 16
BATCH      = 2
SEQ_LEN    = 8       # T <= BLOCK_SIZE

# TODO(synk): nn.Dropout(p=0.1) on attention weights / projection output is a
# training-time op; implemented as identity (eval-mode semantics).


def mha_kernel(idx_col_ref, idx_last_ref, tok_k_ref, pos_k_ref, tok_q_ref,
               tok_v_ref, pos_v_ref, w_ref, b_ref, o_ref, *,
               num_heads, head_size, batch, seq_len, block_size, vocab_size):
    """Single invocation: all batches, all heads.

    idx_col_ref  : (B*T, 1) int32    token ids, flattened batch-major
    idx_last_ref : (B, 1)   int32    last token id per batch row
    tok_*_ref    : (H, V, hs)        token embedding tables
    pos_*_ref    : (H, block, hs)    position embedding tables
    w_ref        : (H, hs, n_embd)   projection weight as per-head blocks
    b_ref        : (1, n_embd)
    o_ref        : (B, n_embd)
    """
    H, hs, B, T, V = num_heads, head_size, batch, seq_len, vocab_size
    G = H * B
    scale = hs ** -0.5

    # ---- fused embedding gather: one-hot(ids) @ table (exact in f32) ----
    ids = idx_col_ref[...]                                          # (B*T, 1)
    tok_iota = jax.lax.broadcasted_iota(jnp.int32, (B * T, V), 1)
    onehot = (ids == tok_iota).astype(jnp.float32)                  # (B*T, V)
    onehot_h = jnp.broadcast_to(onehot[None], (H, B * T, V))        # (H, B*T, V)

    k_tok = jnp.einsum('hnv,hvd->hnd', onehot_h, tok_k_ref[...],
                       preferred_element_type=jnp.float32)          # (H, B*T, hs)
    v_tok = jnp.einsum('hnv,hvd->hnd', onehot_h, tok_v_ref[...],
                       preferred_element_type=jnp.float32)          # (H, B*T, hs)

    # group-major layout g = h*B + b (row-major-consistent leading-dim regroup)
    k = k_tok.reshape(G, T, hs)
    v = v_tok.reshape(G, T, hs)

    # position embeddings for the trailing T-token window (static slice)
    pos_k = pos_k_ref[:, block_size - T:, :]                        # (H, T, hs)
    pos_v = pos_v_ref[:, block_size - T:, :]
    k = k + jnp.broadcast_to(pos_k[:, None], (H, B, T, hs)).reshape(G, T, hs)
    v = v + jnp.broadcast_to(pos_v[:, None], (H, B, T, hs)).reshape(G, T, hs)

    # query = last token only; fold the softmax scale in once
    q_ids = idx_last_ref[...]                                       # (B, 1)
    q_iota = jax.lax.broadcasted_iota(jnp.int32, (B, V), 1)
    q_onehot = (q_ids == q_iota).astype(jnp.float32)                # (B, V)
    q_onehot_h = jnp.broadcast_to(q_onehot[None], (H, B, V))        # (H, B, V)
    q = jnp.einsum('hbv,hvd->hbd', q_onehot_h, tok_q_ref[...],
                   preferred_element_type=jnp.float32)              # (H, B, hs)
    q = (q * scale).reshape(G, 1, hs)

    # ---- attention over all G = H*B groups in two batched einsums ----
    s = jnp.einsum('gqd,gkd->gqk', q, k,
                   preferred_element_type=jnp.float32)              # (G, 1, T)
    s = s - jnp.max(s, axis=-1, keepdims=True)
    p = jnp.exp(s)
    p = p / jnp.sum(p, axis=-1, keepdims=True)
    o = jnp.einsum('gqk,gkd->gqd', p, v,
                   preferred_element_type=jnp.float32)              # (G, 1, hs)

    # ---- projection without concat: per-head matmul, summed over heads ----
    o_hbd = o.reshape(H, B, hs)                                     # (H, B, hs)
    proj = jnp.einsum('hbd,hdn->hbn', o_hbd, w_ref[...],
                      preferred_element_type=jnp.float32)           # (H, B, n_embd)
    o_ref[...] = (jnp.sum(proj, axis=0) + b_ref[...]).astype(o_ref.dtype)


def multi_head_attention(idx, params):
    """Forward pass: everything (gathers + attention + projection) in one kernel."""
    B, T = idx.shape
    H, hs = NUM_HEADS, HEAD_SIZE

    idx_col = idx.reshape(B * T, 1).astype(jnp.int32)        # (B*T, 1)
    idx_last = idx[:, -1:].astype(jnp.int32)                 # (B, 1)

    w3 = params["w"].reshape(H, hs, N_EMBD).astype(jnp.float32)   # (H, hs, n_embd)
    b2 = params["b"].reshape(1, N_EMBD).astype(jnp.float32)       # (1, n_embd)

    kernel = functools.partial(
        mha_kernel, num_heads=H, head_size=hs, batch=B, seq_len=T,
        block_size=BLOCK_SIZE, vocab_size=VOCAB_SIZE)

    in_specs = [pl.BlockSpec(memory_space=pltpu.MemorySpace.VMEM) for _ in range(9)]
    out2d = pl.pallas_call(
        kernel,
        out_shape=jax.ShapeDtypeStruct((B, N_EMBD), jnp.float32),
        in_specs=in_specs,
        out_specs=pl.BlockSpec(memory_space=pltpu.MemorySpace.VMEM),
    )(idx_col, idx_last,
      params["tok_k"].astype(jnp.float32), params["pos_k"].astype(jnp.float32),
      params["tok_q"].astype(jnp.float32),
      params["tok_v"].astype(jnp.float32), params["pos_v"].astype(jnp.float32),
      w3, b2)
    return out2d.reshape(B, 1, N_EMBD)                        # (B, 1, n_embd)


def reference(idx, params):
    """Pure-JAX reference mirroring the PyTorch forward (dropout = identity)."""
    B, T = idx.shape
    pos = jnp.arange(BLOCK_SIZE - T, BLOCK_SIZE)
    outs = []
    for h in range(NUM_HEADS):
        q = params["tok_q"][h][idx[:, -1:]]                              # (B,1,hs)
        k = params["tok_k"][h][idx] + params["pos_k"][h][pos][None]      # (B,T,hs)
        v = params["tok_v"][h][idx] + params["pos_v"][h][pos][None]      # (B,T,hs)
        wei = jnp.einsum("bqd,bkd->bqk", q, k) * HEAD_SIZE ** -0.5
        wei = jax.nn.softmax(wei, axis=-1)
        outs.append(jnp.einsum("bqk,bkd->bqd", wei, v))
    cat = jnp.concatenate(outs, axis=-1)                                 # (B,1,H*hs)
    return cat @ params["w"] + params["b"]                               # (B,1,n_embd)


def init_params(key):
    ks = jax.random.split(key, 7)
    H, hs = NUM_HEADS, HEAD_SIZE
    scale = 0.02
    return {
        "tok_k": scale * jax.random.normal(ks[0], (H, VOCAB_SIZE, hs), jnp.float32),
        "pos_k": scale * jax.random.normal(ks[1], (H, BLOCK_SIZE, hs), jnp.float32),
        "tok_q": scale * jax.random.normal(ks[2], (H, VOCAB_SIZE, hs), jnp.float32),
        "tok_v": scale * jax.random.normal(ks[3], (H, VOCAB_SIZE, hs), jnp.float32),
        "pos_v": scale * jax.random.normal(ks[4], (H, BLOCK_SIZE, hs), jnp.float32),
        # nn.Linear(H*hs, n_embd): stored pre-transposed as (H*hs, n_embd)
        "w": scale * jax.random.normal(ks[5], (H * hs, N_EMBD), jnp.float32),
        "b": scale * jax.random.normal(ks[6], (N_EMBD,), jnp.float32),
    }


if __name__ == "__main__":
    key = jax.random.PRNGKey(0)
    pkey, ikey = jax.random.split(key)
    params = init_params(pkey)

    # x is unused by the PyTorch forward; idx carries the tokens.
    idx = jax.random.randint(ikey, (BATCH, SEQ_LEN), 0, VOCAB_SIZE, dtype=jnp.int32)

    out = multi_head_attention(idx, params)
    out = jax.block_until_ready(out)

    ref = reference(idx, params)
    assert out.shape == (BATCH, 1, N_EMBD), out.shape
    max_err = float(jnp.max(jnp.abs(out - ref)))
    assert jnp.allclose(out, ref, atol=1e-4, rtol=1e-4), max_err

    print("KERNEL_OK")
</pallas_src>

<mosaic_0001>
module attributes {stable_mosaic.version = 11 : i64} {
  func.func @mha_kernel(%arg0: memref<16x1xi32, #tpu.memory_space<vmem>>, %arg1: memref<2x1xi32, #tpu.memory_space<vmem>>, %arg2: memref<4x32x16xf32, #tpu.memory_space<vmem>>, %arg3: memref<4x16x16xf32, #tpu.memory_space<vmem>>, %arg4: memref<4x32x16xf32, #tpu.memory_space<vmem>>, %arg5: memref<4x32x16xf32, #tpu.memory_space<vmem>>, %arg6: memref<4x16x16xf32, #tpu.memory_space<vmem>>, %arg7: memref<4x16x32xf32, #tpu.memory_space<vmem>>, %arg8: memref<1x32xf32, #tpu.memory_space<vmem>>, %arg9: memref<2x32xf32, #tpu.memory_space<vmem>>) attributes {dimension_semantics = [], scalar_prefetch = 0 : i64, scratch_operands = 0 : i64, tpu.core_type = #tpu.core_type<tc>} {
    %c0 = arith.constant 0 : index
    %c0_0 = arith.constant 0 : index
    %0 = vector.load %arg0[%c0, %c0_0] : memref<16x1xi32, #tpu.memory_space<vmem>>, vector<16x1xi32>
    %1 = tpu.iota {dimensions = array<i32: 1>} : vector<16x32xi32>
    %2 = vector.broadcast %0 : vector<16x1xi32> to vector<16x32xi32>
    %3 = arith.cmpi eq, %2, %1 : vector<16x32xi32>
    %4 = arith.extui %3 : vector<16x32xi1> to vector<16x32xi32>
    %5 = arith.sitofp %4 : vector<16x32xi32> to vector<16x32xf32>
    %6 = vector.shape_cast %5 : vector<16x32xf32> to vector<1x16x32xf32>
    %7 = vector.shape_cast %6 : vector<1x16x32xf32> to vector<1x16x32xf32>
    %8 = vector.broadcast %7 : vector<1x16x32xf32> to vector<4x16x32xf32>
    %c0_1 = arith.constant 0 : index
    %c0_2 = arith.constant 0 : index
    %c0_3 = arith.constant 0 : index
    %9 = vector.load %arg2[%c0_1, %c0_2, %c0_3] : memref<4x32x16xf32, #tpu.memory_space<vmem>>, vector<4x32x16xf32>
    "tpu.trace_start"() <{level = 10 : i32, message = "hnv,hvd->hnd"}> : () -> ()
    %cst = arith.constant dense<0.000000e+00> : vector<4x16x16xf32>
    %10 = tpu.matmul %8, %9, %cst {dimension_numbers = #tpu.dot_dimension_numbers<[2], [1], [1], [2], [0, 0, 0, 1, 1, 2], [0], [0]>} : vector<4x16x32xf32>, vector<4x32x16xf32>, vector<4x16x16xf32> -> vector<4x16x16xf32>
    "tpu.trace_stop"() : () -> ()
    %c0_4 = arith.constant 0 : index
    %c0_5 = arith.constant 0 : index
    %c0_6 = arith.constant 0 : index
    %11 = vector.load %arg5[%c0_4, %c0_5, %c0_6] : memref<4x32x16xf32, #tpu.memory_space<vmem>>, vector<4x32x16xf32>
    "tpu.trace_start"() <{level = 10 : i32, message = "hnv,hvd->hnd"}> : () -> ()
    %cst_7 = arith.constant dense<0.000000e+00> : vector<4x16x16xf32>
    %12 = tpu.matmul %8, %11, %cst_7 {dimension_numbers = #tpu.dot_dimension_numbers<[2], [1], [1], [2], [0, 0, 0, 1, 1, 2], [0], [0]>} : vector<4x16x32xf32>, vector<4x32x16xf32>, vector<4x16x16xf32> -> vector<4x16x16xf32>
    "tpu.trace_stop"() : () -> ()
    %13 = vector.shape_cast %10 : vector<4x16x16xf32> to vector<8x8x16xf32>
    %14 = vector.shape_cast %12 : vector<4x16x16xf32> to vector<8x8x16xf32>
    %c0_8 = arith.constant 0 : index
    %c8 = arith.constant 8 : index
    %c0_9 = arith.constant 0 : index
    %15 = vector.load %arg3[%c0_8, %c8, %c0_9] : memref<4x16x16xf32, #tpu.memory_space<vmem>>, vector<4x8x16xf32>
    %c0_10 = arith.constant 0 : index
    %c8_11 = arith.constant 8 : index
    %c0_12 = arith.constant 0 : index
    %16 = vector.load %arg6[%c0_10, %c8_11, %c0_12] : memref<4x16x16xf32, #tpu.memory_space<vmem>>, vector<4x8x16xf32>
    %17 = vector.shape_cast %15 : vector<4x8x16xf32> to vector<4x1x8x16xf32>
    %18 = vector.shape_cast %17 : vector<4x1x8x16xf32> to vector<4x1x8x16xf32>
    %19 = vector.broadcast %18 : vector<4x1x8x16xf32> to vector<4x2x8x16xf32>
    %20 = vector.shape_cast %19 : vector<4x2x8x16xf32> to vector<8x8x16xf32>
    %21 = arith.addf %13, %20 : vector<8x8x16xf32>
    %22 = vector.shape_cast %16 : vector<4x8x16xf32> to vector<4x1x8x16xf32>
    %23 = vector.shape_cast %22 : vector<4x1x8x16xf32> to vector<4x1x8x16xf32>
    %24 = vector.broadcast %23 : vector<4x1x8x16xf32> to vector<4x2x8x16xf32>
    %25 = vector.shape_cast %24 : vector<4x2x8x16xf32> to vector<8x8x16xf32>
    %26 = arith.addf %14, %25 : vector<8x8x16xf32>
    %c0_13 = arith.constant 0 : index
    %c0_14 = arith.constant 0 : index
    %27 = vector.load %arg1[%c0_13, %c0_14] : memref<2x1xi32, #tpu.memory_space<vmem>>, vector<2x1xi32>
    %28 = tpu.iota {dimensions = array<i32: 1>} : vector<2x32xi32>
    %29 = vector.broadcast %27 : vector<2x1xi32> to vector<2x32xi32>
    %30 = arith.cmpi eq, %29, %28 : vector<2x32xi32>
    %31 = arith.extui %30 : vector<2x32xi1> to vector<2x32xi32>
    %32 = arith.sitofp %31 : vector<2x32xi32> to vector<2x32xf32>
    %33 = vector.shape_cast %32 : vector<2x32xf32> to vector<1x2x32xf32>
    %34 = vector.shape_cast %33 : vector<1x2x32xf32> to vector<1x2x32xf32>
    %35 = vector.broadcast %34 : vector<1x2x32xf32> to vector<4x2x32xf32>
    %c0_15 = arith.constant 0 : index
    %c0_16 = arith.constant 0 : index
    %c0_17 = arith.constant 0 : index
    %36 = vector.load %arg4[%c0_15, %c0_16, %c0_17] : memref<4x32x16xf32, #tpu.memory_space<vmem>>, vector<4x32x16xf32>
    "tpu.trace_start"() <{level = 10 : i32, message = "hbv,hvd->hbd"}> : () -> ()
    %cst_18 = arith.constant dense<0.000000e+00> : vector<4x2x16xf32>
    %37 = tpu.matmul %35, %36, %cst_18 {dimension_numbers = #tpu.dot_dimension_numbers<[2], [1], [1], [2], [0, 0, 0, 1, 1, 2], [0], [0]>} : vector<4x2x32xf32>, vector<4x32x16xf32>, vector<4x2x16xf32> -> vector<4x2x16xf32>
    "tpu.trace_stop"() : () -> ()
    %cst_19 = arith.constant 2.500000e-01 : f32
    %38 = vector.broadcast %cst_19 : f32 to vector<4x2x16xf32>
    %39 = arith.mulf %37, %38 : vector<4x2x16xf32>
    %40 = vector.shape_cast %39 : vector<4x2x16xf32> to vector<8x1x16xf32>
    "tpu.trace_start"() <{level = 10 : i32, message = "gqd,gkd->gqk"}> : () -> ()
    %cst_20 = arith.constant dense<0.000000e+00> : vector<8x1x8xf32>
    %41 = tpu.matmul %40, %21, %cst_20 {dimension_numbers = #tpu.dot_dimension_numbers<[2], [2], [1], [1], [0, 0, 0, 1, 1, 1], [0], [0]>} : vector<8x1x16xf32>, vector<8x8x16xf32>, vector<8x1x8xf32> -> vector<8x1x8xf32>
    "tpu.trace_stop"() : () -> ()
    %cst_21 = arith.constant dense<0xFF800000> : vector<8x1xf32>
    %42 = vector.multi_reduction <maximumf>, %41, %cst_21 [2] : vector<8x1x8xf32> to vector<8x1xf32>
    %43 = vector.shape_cast %42 : vector<8x1xf32> to vector<8x1x1xf32>
    %44 = vector.broadcast %43 : vector<8x1x1xf32> to vector<8x1x8xf32>
    %45 = arith.subf %41, %44 : vector<8x1x8xf32>
    %46 = math.exp %45 : vector<8x1x8xf32>
    %cst_22 = arith.constant dense<0.000000e+00> : vector<8x1xf32>
    %47 = vector.multi_reduction <add>, %46, %cst_22 [2] : vector<8x1x8xf32> to vector<8x1xf32>
    %48 = vector.shape_cast %47 : vector<8x1xf32> to vector<8x1x1xf32>
    %49 = vector.broadcast %48 : vector<8x1x1xf32> to vector<8x1x8xf32>
    %50 = arith.divf %46, %49 : vector<8x1x8xf32>
    "tpu.trace_start"() <{level = 10 : i32, message = "gqk,gkd->gqd"}> : () -> ()
    %cst_23 = arith.constant dense<0.000000e+00> : vector<8x1x16xf32>
    %51 = tpu.matmul %50, %26, %cst_23 {dimension_numbers = #tpu.dot_dimension_numbers<[2], [1], [1], [2], [0, 0, 0, 1, 1, 2], [0], [0]>} : vector<8x1x8xf32>, vector<8x8x16xf32>, vector<8x1x16xf32> -> vector<8x1x16xf32>
    "tpu.trace_stop"() : () -> ()
    %52 = vector.shape_cast %51 : vector<8x1x16xf32> to vector<4x2x16xf32>
    %c0_24 = arith.constant 0 : index
    %c0_25 = arith.constant 0 : index
    %c0_26 = arith.constant 0 : index
    %53 = vector.load %arg7[%c0_24, %c0_25, %c0_26] : memref<4x16x32xf32, #tpu.memory_space<vmem>>, vector<4x16x32xf32>
    "tpu.trace_start"() <{level = 10 : i32, message = "hbd,hdn->hbn"}> : () -> ()
    %cst_27 = arith.constant dense<0.000000e+00> : vector<4x2x32xf32>
    %54 = tpu.matmul %52, %53, %cst_27 {dimension_numbers = #tpu.dot_dimension_numbers<[2], [1], [1], [2], [0, 0, 0, 1, 1, 2], [0], [0]>} : vector<4x2x16xf32>, vector<4x16x32xf32>, vector<4x2x32xf32> -> vector<4x2x32xf32>
    "tpu.trace_stop"() : () -> ()
    %cst_28 = arith.constant dense<0.000000e+00> : vector<2x32xf32>
    %55 = vector.multi_reduction <add>, %54, %cst_28 [0] : vector<4x2x32xf32> to vector<2x32xf32>
    %c0_29 = arith.constant 0 : index
    %c0_30 = arith.constant 0 : index
    %56 = vector.load %arg8[%c0_29, %c0_30] : memref<1x32xf32, #tpu.memory_space<vmem>>, vector<1x32xf32>
    %57 = vector.broadcast %56 : vector<1x32xf32> to vector<2x32xf32>
    %58 = arith.addf %55, %57 : vector<2x32xf32>
    %c0_31 = arith.constant 0 : index
    %c0_32 = arith.constant 0 : index
    %59 = vector.load %arg9[%c0_31, %c0_32] : memref<2x32xf32, #tpu.memory_space<vmem>>, vector<2x32xf32>
    tpu.vector_store %arg9[%c0_31, %c0_32], %58 {strides = array<i32>} : memref<2x32xf32, #tpu.memory_space<vmem>>, vector<2x32xf32>,
    return
  }
}

</mosaic_0001>

<llo_original>
// kernel: tpu_custom_call.1
$region0: #{tpu_custom_call.1}
  #allocation0 [shape = 'u32[]', space=smem, size = 0x4, offset = 0x4, fixed_abs, tag = 'smem constant byte address 0x4 - core index']
  #allocation1 [shape = 'u32[72,128]{1,0:T(1,128)}', space=vmem, size = 0x9000, scoped, tag = 'internal scratch']
  %s0 = inlined_call_operand.vmem [shape: s32[16,1], index: 0, kind: input, shape index: {}]
  %s1 = inlined_call_operand.vmem [shape: s32[2,1], index: 1, kind: input, shape index: {}]
  %s2 = inlined_call_operand.vmem [shape: f32[4,32,16], index: 2, kind: input, shape index: {}]
  %s3 = inlined_call_operand.vmem [shape: f32[4,16,16], index: 3, kind: input, shape index: {}]
  %s4 = inlined_call_operand.vmem [shape: f32[4,32,16], index: 4, kind: input, shape index: {}]
  %s5 = inlined_call_operand.vmem [shape: f32[4,32,16], index: 5, kind: input, shape index: {}]
  %s6 = inlined_call_operand.vmem [shape: f32[4,16,16], index: 6, kind: input, shape index: {}]
  %s7 = inlined_call_operand.vmem [shape: f32[4,16,32], index: 7, kind: input, shape index: {}]
  %s8 = inlined_call_operand.vmem [shape: f32[1,32], index: 8, kind: input, shape index: {}]
  %s9 = inlined_call_operand.hbm [shape: f32[2,32], index: 9, kind: output, shape index: {}]
  %s10 = sld [smem:[#allocation0]]
  $region46: #{tpu_custom_call.1} parent=0
    _
  %s12 = ssub.s32 1, %s10
  %s13 = scalar_select 0, %s12, %s10
  $region1: #{tpu_custom_call.1} parent=0
    #allocation2 [shape = 'u8[1024]{0}', space=vmem, size = 0x400, scoped, tag = 'output window, operand 0, single buffered']
    #allocation3 [shape = 's32[1]{0}', space=sflag, size = 0x4, scoped, tag = 'scoped memory for tpu_custom_call.1']
    %14 = vsyncpa [#allocation3], 0
    // Predicated region
    $region2: #{tpu_custom_call.1} parent=1 // pred_check
      _
    $region3: #{tpu_custom_call.1} parent=1 // pred_check_branch
      %16 = sbr.rel (0) target = $region5
    $region4: #{tpu_custom_call.1} parent=1 // pred_region
      _
    $region5: #{tpu_custom_call.1} parent=1 // pred_fallthru
      _
    // Predicated region
    $region6: #{tpu_custom_call.1} parent=1 // pred_check
      _
    $region7: #{tpu_custom_call.1} parent=1 // pred_check_branch
      %18 = sbr.rel (0) target = $region9
    $region8: #{tpu_custom_call.1} parent=1 // pred_region
      _
    $region9: #{tpu_custom_call.1} parent=1 // pred_fallthru
      _
    // Predicated region
    $region10: #{tpu_custom_call.1} parent=1 // pred_check
      _
    $region11: #{tpu_custom_call.1} parent=1 // pred_check_branch
      %20 = sbr.rel (0) target = $region13
    $region12: #{tpu_custom_call.1} parent=1 // pred_region
      _
    $region13: #{tpu_custom_call.1} parent=1 // pred_fallthru
      _
    // Predicated region
    $region14: #{tpu_custom_call.1} parent=1 // pred_check
      _
    $region15: #{tpu_custom_call.1} parent=1 // pred_check_branch
      %22 = sbr.rel (0) target = $region17
    $region16: #{tpu_custom_call.1} parent=1 // pred_region
      _
    $region17: #{tpu_custom_call.1} parent=1 // pred_fallthru
      _
    // Predicated region
    $region18: #{tpu_custom_call.1} parent=1 // pred_check
      _
    $region19: #{tpu_custom_call.1} parent=1 // pred_check_branch
      %24 = sbr.rel (0) target = $region21
    $region20: #{tpu_custom_call.1} parent=1 // pred_region
      _
    $region21: #{tpu_custom_call.1} parent=1 // pred_fallthru
      _
    // Predicated region
    $region22: #{tpu_custom_call.1} parent=1 // pred_check
      _
    $region23: #{tpu_custom_call.1} parent=1 // pred_check_branch
      %26 = sbr.rel (0) target = $region25
    $region24: #{tpu_custom_call.1} parent=1 // pred_region
      _
    $region25: #{tpu_custom_call.1} parent=1 // pred_fallthru
      _
    // Predicated region
    $region26: #{tpu_custom_call.1} parent=1 // pred_check
      _
    $region27: #{tpu_custom_call.1} parent=1 // pred_check_branch
      %28 = sbr.rel (0) target = $region29
    $region28: #{tpu_custom_call.1} parent=1 // pred_region
      _
    $region29: #{tpu_custom_call.1} parent=1 // pred_fallthru
      _
    // Predicated region
    $region30: #{tpu_custom_call.1} parent=1 // pred_check
      _
    $region31: #{tpu_custom_call.1} parent=1 // pred_check_branch
      %30 = sbr.rel (0) target = $region33
    $region32: #{tpu_custom_call.1} parent=1 // pred_region
      _
    $region33: #{tpu_custom_call.1} parent=1 // pred_fallthru
      _
    // Predicated region
    $region34: #{tpu_custom_call.1} parent=1 // pred_check
      _
    $region35: #{tpu_custom_call.1} parent=1 // pred_check_branch
      %32 = sbr.rel (0) target = $region37
    $region36: #{tpu_custom_call.1} parent=1 // pred_region
      _
    $region37: #{tpu_custom_call.1} parent=1 // pred_fallthru
      _
    %v33 = vld [vmem:[%s0] sm:$0xff]
    %v34 = vld [vmem:[%s0 + $0x8] sm:$0xff]
    %v35 = vlaneseq
    %v36 = vand.u32 %v35, 127
    %37 = vset.pattern.permute.xlu0 0
    %38 = vperm.xlu0 %37, %v33
    %v39 = vpop.permute.xlu0 %38
    %40 = vset.pattern.permute.xlu0 0
    %41 = vperm.xlu0 %40, %v34
    %v42 = vpop.permute.xlu0 %41
    %vm43 = vcmp.eq.s32.totalorder %v39, %v36
    %vm44 = vcmp.eq.s32.totalorder %v42, %v36
    %v45 = vsel %vm43, 1, 0
    %v46 = vsel %vm44, 1, 0
    %v47 = vcvt.s32.f32 %v45
    %v48 = vcvt.s32.f32 %v46
    %v49 = vld [vmem:[%s2] sm:$0xff]
    %v50 = vld [vmem:[%s2 + $0x8] sm:$0xff]
    %v51 = vld [vmem:[%s2 + $0x10] sm:$0xff]
    %v52 = vld [vmem:[%s2 + $0x18] sm:$0xff]
    %v53 = vld [vmem:[%s2 + $0x20] sm:$0xff]
    %v54 = vld [vmem:[%s2 + $0x28] sm:$0xff]
    %v55 = vld [vmem:[%s2 + $0x30] sm:$0xff]
    %v56 = vld [vmem:[%s2 + $0x38] sm:$0xff]
    %v57 = vld [vmem:[%s2 + $0x40] sm:$0xff]
    %v58 = vld [vmem:[%s2 + $0x48] sm:$0xff]
    %v59 = vld [vmem:[%s2 + $0x50] sm:$0xff]
    %v60 = vld [vmem:[%s2 + $0x58] sm:$0xff]
    %v61 = vld [vmem:[%s2 + $0x60] sm:$0xff]
    %v62 = vld [vmem:[%s2 + $0x68] sm:$0xff]
    %v63 = vld [vmem:[%s2 + $0x70] sm:$0xff]
    %v64 = vld [vmem:[%s2 + $0x78] sm:$0xff]
    %vm65 = vcmask 261120
    %v67 = vsel %vm65, %v47, 0
    %v70 = vsel %vm65, %v48, 0
    %72 = vmatpush.msra.mxu0 0.0
    %73 = vmatpush.msra.mxu0 0.0
    %74 = vmatpush.msra.mxu0 0.0
    %75 = vmatpush.msra.mxu0 0.0
    %76 = vmatpush.msra.mxu0 0.0
    %77 = vmatpush.msra.mxu0 0.0
    %78 = vmatpush.msra.mxu0 0.0
    %79 = vmatpush.msra.mxu0 0.0
    %80 = vmatpush.msra.mxu0 0.0
    %81 = vmatpush.msra.mxu0 0.0
    %82 = vmatpush.msra.mxu0 0.0
    %83 = vmatpush.msra.mxu0 0.0
    %84 = vmatpush.msra.mxu0 %v52
    %85 = vmatpush.msra.mxu0 %v51
    %86 = vmatpush.msra.mxu0 %v50
    %87 = vmatpush.msra.mxu0 %v49
    %88 = vmatmul.f32.gmra.mxu0 %v67
    %v89 = vpop.f32.mrf.mxu0
    %v90 = vadd.f32 0.0, %v89
    %91 = vmatmul.f32.gmra.mxu0 %v70
    %v92 = vpop.f32.mrf.mxu0
    %v93 = vadd.f32 0.0, %v92
    %94 = vdwg.mxu0
    %95 = vmatpush.msra.mxu0 0.0
    %96 = vmatpush.msra.mxu0 0.0
    %97 = vmatpush.msra.mxu0 0.0
    %98 = vmatpush.msra.mxu0 0.0
    %99 = vmatpush.msra.mxu0 0.0
    %100 = vmatpush.msra.mxu0 0.0
    %101 = vmatpush.msra.mxu0 0.0
    %102 = vmatpush.msra.mxu0 0.0
    %103 = vmatpush.msra.mxu0 0.0
    %104 = vmatpush.msra.mxu0 0.0
    %105 = vmatpush.msra.mxu0 0.0
    %106 = vmatpush.msra.mxu0 0.0
    %107 = vmatpush.msra.mxu0 %v56
    %108 = vmatpush.msra.mxu0 %v55
    %109 = vmatpush.msra.mxu0 %v54
    %110 = vmatpush.msra.mxu0 %v53
    %111 = vmatmul.f32.gmra.mxu0 %v67
    %v112 = vpop.f32.mrf.mxu0
    %v113 = vadd.f32 0.0, %v112
    %114 = vmatmul.f32.gmra.mxu0 %v70
    %v115 = vpop.f32.mrf.mxu0
    %v116 = vadd.f32 0.0, %v115
    %117 = vdwg.mxu0
    %118 = vmatpush.msra.mxu0 0.0
    %119 = vmatpush.msra.mxu0 0.0
    %120 = vmatpush.msra.mxu0 0.0
    %121 = vmatpush.msra.mxu0 0.0
    %122 = vmatpush.msra.mxu0 0.0
    %123 = vmatpush.msra.mxu0 0.0
    %124 = vmatpush.msra.mxu0 0.0
    %125 = vmatpush.msra.mxu0 0.0
    %126 = vmatpush.msra.mxu0 0.0
    %127 = vmatpush.msra.mxu0 0.0
    %128 = vmatpush.msra.mxu0 0.0
    %129 = vmatpush.msra.mxu0 0.0
    %130 = vmatpush.msra.mxu0 %v60
    %131 = vmatpush.msra.mxu0 %v59
    %132 = vmatpush.msra.mxu0 %v58
    %133 = vmatpush.msra.mxu0 %v57
    %134 = vmatmul.f32.gmra.mxu0 %v67
    %v135 = vpop.f32.mrf.mxu0
    %v136 = vadd.f32 0.0, %v135
    %137 = vmatmul.f32.gmra.mxu0 %v70
    %v138 = vpop.f32.mrf.mxu0
    %v139 = vadd.f32 0.0, %v138
    %140 = vdwg.mxu0
    %141 = vmatpush.msra.mxu0 0.0
    %142 = vmatpush.msra.mxu0 0.0
    %143 = vmatpush.msra.mxu0 0.0
    %144 = vmatpush.msra.mxu0 0.0
    %145 = vmatpush.msra.mxu0 0.0
    %146 = vmatpush.msra.mxu0 0.0
    %147 = vmatpush.msra.mxu0 0.0
    %148 = vmatpush.msra.mxu0 0.0
    %149 = vmatpush.msra.mxu0 0.0
    %150 = vmatpush.msra.mxu0 0.0
    %151 = vmatpush.msra.mxu0 0.0
    %152 = vmatpush.msra.mxu0 0.0
    %153 = vmatpush.msra.mxu0 %v64
    %154 = vmatpush.msra.mxu0 %v63
    %155 = vmatpush.msra.mxu0 %v62
    %156 = vmatpush.msra.mxu0 %v61
    %157 = vmatmul.f32.gmra.mxu0 %v67
    %v158 = vpop.f32.mrf.mxu0
    %v159 = vadd.f32 0.0, %v158
    %160 = vmatmul.f32.gmra.mxu0 %v70
    %v161 = vpop.f32.mrf.mxu0
    %v162 = vadd.f32 0.0, %v161
    %163 = vdwg.mxu0
    %v164 = vld [vmem:[%s5] sm:$0xff]
    %v165 = vld [vmem:[%s5 + $0x8] sm:$0xff]
    %v166 = vld [vmem:[%s5 + $0x10] sm:$0xff]
    %v167 = vld [vmem:[%s5 + $0x18] sm:$0xff]
    %v168 = vld [vmem:[%s5 + $0x20] sm:$0xff]
    %v169 = vld [vmem:[%s5 + $0x28] sm:$0xff]
    %v170 = vld [vmem:[%s5 + $0x30] sm:$0xff]
    %v171 = vld [vmem:[%s5 + $0x38] sm:$0xff]
    %v172 = vld [vmem:[%s5 + $0x40] sm:$0xff]
    %v173 = vld [vmem:[%s5 + $0x48] sm:$0xff]
    %v174 = vld [vmem:[%s5 + $0x50] sm:$0xff]
    %v175 = vld [vmem:[%s5 + $0x58] sm:$0xff]
    %v176 = vld [vmem:[%s5 + $0x60] sm:$0xff]
    %v177 = vld [vmem:[%s5 + $0x68] sm:$0xff]
    %v178 = vld [vmem:[%s5 + $0x70] sm:$0xff]
    %v179 = vld [vmem:[%s5 + $0x78] sm:$0xff]
    %180 = vmatpush.msra.mxu0 0.0
    %181 = vmatpush.msra.mxu0 0.0
    %182 = vmatpush.msra.mxu0 0.0
    %183 = vmatpush.msra.mxu0 0.0
    %184 = vmatpush.msra.mxu0 0.0
    %185 = vmatpush.msra.mxu0 0.0
    %186 = vmatpush.msra.mxu0 0.0
    %187 = vmatpush.msra.mxu0 0.0
    %188 = vmatpush.msra.mxu0 0.0
    %189 = vmatpush.msra.mxu0 0.0
    %190 = vmatpush.msra.mxu0 0.0
    %191 = vmatpush.msra.mxu0 0.0
    %192 = vmatpush.msra.mxu0 %v167
    %193 = vmatpush.msra.mxu0 %v166
    %194 = vmatpush.msra.mxu0 %v165
    %195 = vmatpush.msra.mxu0 %v164
    %196 = vmatmul.f32.gmra.mxu0 %v67
    %v197 = vpop.f32.mrf.mxu0
    %v198 = vadd.f32 0.0, %v197
    %199 = vmatmul.f32.gmra.mxu0 %v70
    %v200 = vpop.f32.mrf.mxu0
    %v201 = vadd.f32 0.0, %v200
    %202 = vdwg.mxu0
    %203 = vmatpush.msra.mxu0 0.0
    %204 = vmatpush.msra.mxu0 0.0
    %205 = vmatpush.msra.mxu0 0.0
    %206 = vmatpush.msra.mxu0 0.0
    %207 = vmatpush.msra.mxu0 0.0
    %208 = vmatpush.msra.mxu0 0.0
    %209 = vmatpush.msra.mxu0 0.0
    %210 = vmatpush.msra.mxu0 0.0
    %211 = vmatpush.msra.mxu0 0.0
    %212 = vmatpush.msra.mxu0 0.0
    %213 = vmatpush.msra.mxu0 0.0
    %214 = vmatpush.msra.mxu0 0.0
    %215 = vmatpush.msra.mxu0 %v171
    %216 = vmatpush.msra.mxu0 %v170
    %217 = vmatpush.msra.mxu0 %v169
    %218 = vmatpush.msra.mxu0 %v168
    %219 = vmatmul.f32.gmra.mxu0 %v67
    %v220 = vpop.f32.mrf.mxu0
    %v221 = vadd.f32 0.0, %v220
    %222 = vmatmul.f32.gmra.mxu0 %v70
    %v223 = vpop.f32.mrf.mxu0
    %v224 = vadd.f32 0.0, %v223
    %225 = vdwg.mxu0
    %226 = vmatpush.msra.mxu0 0.0
    %227 = vmatpush.msra.mxu0 0.0
    %228 = vmatpush.msra.mxu0 0.0
    %229 = vmatpush.msra.mxu0 0.0
    %230 = vmatpush.msra.mxu0 0.0
    %231 = vmatpush.msra.mxu0 0.0
    %232 = vmatpush.msra.mxu0 0.0
    %233 = vmatpush.msra.mxu0 0.0
    %234 = vmatpush.msra.mxu0 0.0
    %235 = vmatpush.msra.mxu0 0.0
    %236 = vmatpush.msra.mxu0 0.0
    %237 = vmatpush.msra.mxu0 0.0
    %238 = vmatpush.msra.mxu0 %v175
    %239 = vmatpush.msra.mxu0 %v174
    %240 = vmatpush.msra.mxu0 %v173
    %241 = vmatpush.msra.mxu0 %v172
    %242 = vmatmul.f32.gmra.mxu0 %v67
    %v243 = vpop.f32.mrf.mxu0
    %v244 = vadd.f32 0.0, %v243
    %245 = vmatmul.f32.gmra.mxu0 %v70
    %v246 = vpop.f32.mrf.mxu0
    %v247 = vadd.f32 0.0, %v246
    %248 = vdwg.mxu0
    %249 = vmatpush.msra.mxu0 0.0
    %250 = vmatpush.msra.mxu0 0.0
    %251 = vmatpush.msra.mxu0 0.0
    %252 = vmatpush.msra.mxu0 0.0
    %253 = vmatpush.msra.mxu0 0.0
    %254 = vmatpush.msra.mxu0 0.0
    %255 = vmatpush.msra.mxu0 0.0
    %256 = vmatpush.msra.mxu0 0.0
    %257 = vmatpush.msra.mxu0 0.0
    %258 = vmatpush.msra.mxu0 0.0
    %259 = vmatpush.msra.mxu0 0.0
    %260 = vmatpush.msra.mxu0 0.0
    %261 = vmatpush.msra.mxu0 %v179
    %262 = vmatpush.msra.mxu0 %v178
    %263 = vmatpush.msra.mxu0 %v177
    %264 = vmatpush.msra.mxu0 %v176
    %265 = vmatmul.f32.gmra.mxu0 %v67
    %v266 = vpop.f32.mrf.mxu0
    %v267 = vadd.f32 0.0, %v266
    %268 = vmatmul.f32.gmra.mxu0 %v70
    %v269 = vpop.f32.mrf.mxu0
    %v270 = vadd.f32 0.0, %v269
    %271 = vdwg.mxu0
    %v272 = vld [vmem:[%s3 + $0x8] sm:$0xff]
    %v273 = vld [vmem:[%s3 + $0x18] sm:$0xff]
    %v274 = vld [vmem:[%s3 + $0x28] sm:$0xff]
    %v275 = vld [vmem:[%s3 + $0x38] sm:$0xff]
    %v276 = vld [vmem:[%s6 + $0x8] sm:$0xff]
    %v277 = vld [vmem:[%s6 + $0x18] sm:$0xff]
    %v278 = vld [vmem:[%s6 + $0x28] sm:$0xff]
    %v279 = vld [vmem:[%s6 + $0x38] sm:$0xff]
    %v280 = vadd.f32 %v90, %v272
    %v281 = vadd.f32 %v93, %v272
    %v282 = vadd.f32 %v113, %v273
    %v283 = vadd.f32 %v116, %v273
    %v284 = vadd.f32 %v136, %v274
    %v285 = vadd.f32 %v139, %v274
    %v286 = vadd.f32 %v159, %v275
    %v287 = vadd.f32 %v162, %v275
    %v288 = vadd.f32 %v198, %v276
    %v289 = vadd.f32 %v201, %v276
    %v290 = vadd.f32 %v221, %v277
    %v291 = vadd.f32 %v224, %v277
    %v292 = vadd.f32 %v244, %v278
    %v293 = vadd.f32 %v247, %v278
    %v294 = vadd.f32 %v267, %v279
    %v295 = vadd.f32 %v270, %v279
    %v296 = vld [vmem:[%s1] sm:$0x3]
    %297 = vset.pattern.permute.xlu0 0
    %298 = vperm.xlu0 %297, %v296
    %v299 = vpop.permute.xlu0 %298
    %vm300 = vcmp.eq.s32.totalorder %v299, %v36
    %v301 = vsel %vm300, 1, 0
    %v302 = vcvt.s32.f32 %v301
    %v303 = vld [vmem:[%s4] sm:$0xff]
    %v304 = vld [vmem:[%s4 + $0x8] sm:$0xff]
    %v305 = vld [vmem:[%s4 + $0x10] sm:$0xff]
    %v306 = vld [vmem:[%s4 + $0x18] sm:$0xff]
    %v307 = vld [vmem:[%s4 + $0x20] sm:$0xff]
    %v308 = vld [vmem:[%s4 + $0x28] sm:$0xff]
    %v309 = vld [vmem:[%s4 + $0x30] sm:$0xff]
    %v310 = vld [vmem:[%s4 + $0x38] sm:$0xff]
    %v311 = vld [vmem:[%s4 + $0x40] sm:$0xff]
    %v312 = vld [vmem:[%s4 + $0x48] sm:$0xff]
    %v313 = vld [vmem:[%s4 + $0x50] sm:$0xff]
    %v314 = vld [vmem:[%s4 + $0x58] sm:$0xff]
    %v315 = vld [vmem:[%s4 + $0x60] sm:$0xff]
    %v316 = vld [vmem:[%s4 + $0x68] sm:$0xff]
    %v317 = vld [vmem:[%s4 + $0x70] sm:$0xff]
    %v318 = vld [vmem:[%s4 + $0x78] sm:$0xff]
    %v320 = vsel %vm65, %v302, 0
    %322 = vmatpush.msra.mxu0 0.0
    %323 = vmatpush.msra.mxu0 0.0
    %324 = vmatpush.msra.mxu0 0.0
    %325 = vmatpush.msra.mxu0 0.0
    %326 = vmatpush.msra.mxu0 0.0
    %327 = vmatpush.msra.mxu0 0.0
    %328 = vmatpush.msra.mxu0 0.0
    %329 = vmatpush.msra.mxu0 0.0
    %330 = vmatpush.msra.mxu0 0.0
    %331 = vmatpush.msra.mxu0 0.0
    %332 = vmatpush.msra.mxu0 0.0
    %333 = vmatpush.msra.mxu0 0.0
    %334 = vmatpush.msra.mxu0 %v306
    %335 = vmatpush.msra.mxu0 %v305
    %336 = vmatpush.msra.mxu0 %v304
    %337 = vmatpush.msra.mxu0 %v303
    %338 = vmatmul.f32.gmra.mxu0 %v320
    %v339 = vpop.f32.mrf.mxu0
    %v340 = vadd.f32 0.0, %v339
    %341 = vdwg.mxu0
    %342 = vmatpush.msra.mxu0 0.0
    %343 = vmatpush.msra.mxu0 0.0
    %344 = vmatpush.msra.mxu0 0.0
    %345 = vmatpush.msra.mxu0 0.0
    %346 = vmatpush.msra.mxu0 0.0
    %347 = vmatpush.msra.mxu0 0.0
    %348 = vmatpush.msra.mxu0 0.0
    %349 = vmatpush.msra.mxu0 0.0
    %350 = vmatpush.msra.mxu0 0.0
    %351 = vmatpush.msra.mxu0 0.0
    %352 = vmatpush.msra.mxu0 0.0
    %353 = vmatpush.msra.mxu0 0.0
    %354 = vmatpush.msra.mxu0 %v310
    %355 = vmatpush.msra.mxu0 %v309
    %356 = vmatpush.msra.mxu0 %v308
    %357 = vmatpush.msra.mxu0 %v307
    %358 = vmatmul.f32.gmra.mxu0 %v320
    %v359 = vpop.f32.mrf.mxu0
    %v360 = vadd.f32 0.0, %v359
    %361 = vdwg.mxu0
    %362 = vmatpush.msra.mxu0 0.0
    %363 = vmatpush.msra.mxu0 0.0
    %364 = vmatpush.msra.mxu0 0.0
    %365 = vmatpush.msra.mxu0 0.0
    %366 = vmatpush.msra.mxu0 0.0
    %367 = vmatpush.msra.mxu0 0.0
    %368 = vmatpush.msra.mxu0 0.0
    %369 = vmatpush.msra.mxu0 0.0
    %370 = vmatpush.msra.mxu0 0.0
    %371 = vmatpush.msra.mxu0 0.0
    %372 = vmatpush.msra.mxu0 0.0
    %373 = vmatpush.msra.mxu0 0.0
    %374 = vmatpush.msra.mxu0 %v314
    %375 = vmatpush.msra.mxu0 %v313
    %376 = vmatpush.msra.mxu0 %v312
    %377 = vmatpush.msra.mxu0 %v311
    %378 = vmatmul.f32.gmra.mxu0 %v320
    %v379 = vpop.f32.mrf.mxu0
    %v380 = vadd.f32 0.0, %v379
    %381 = vdwg.mxu0
    %382 = vmatpush.msra.mxu0 0.0
    %383 = vmatpush.msra.mxu0 0.0
    %384 = vmatpush.msra.mxu0 0.0
    %385 = vmatpush.msra.mxu0 0.0
    %386 = vmatpush.msra.mxu0 0.0
    %387 = vmatpush.msra.mxu0 0.0
    %388 = vmatpush.msra.mxu0 0.0
    %389 = vmatpush.msra.mxu0 0.0
    %390 = vmatpush.msra.mxu0 0.0
    %391 = vmatpush.msra.mxu0 0.0
    %392 = vmatpush.msra.mxu0 0.0
    %393 = vmatpush.msra.mxu0 0.0
    %394 = vmatpush.msra.mxu0 %v318
    %395 = vmatpush.msra.mxu0 %v317
    %396 = vmatpush.msra.mxu0 %v316
    %397 = vmatpush.msra.mxu0 %v315
    %398 = vmatmul.f32.gmra.mxu0 %v320
    %v399 = vpop.f32.mrf.mxu0
    %v400 = vadd.f32 0.0, %v399
    %401 = vdwg.mxu0
    %v402 = vmul.f32 %v340, 0.25
    %v403 = vmul.f32 %v360, 0.25
    %v404 = vmul.f32 %v380, 0.25
    %v405 = vmul.f32 %v400, 0.25
    %v410 = vrot.slane %v402, 1
    %v411 = vrot.slane %v403, 1
    %v412 = vrot.slane %v404, 1
    %v413 = vrot.slane %v405, 1
    %vm414 = vcmask 130048
    %v415 = vsel %vm414, %v402, 0
    %v418 = vsel %vm414, %v280, 0
    %420 = vmatpush.xpose.msra.mxu0 0.0
    %421 = vmatpush.xpose.msra.mxu0 0.0
    %422 = vmatpush.xpose.msra.mxu0 0.0
    %423 = vmatpush.xpose.msra.mxu0 0.0
    %424 = vmatpush.xpose.msra.mxu0 0.0
    %425 = vmatpush.xpose.msra.mxu0 0.0
    %426 = vmatpush.xpose.msra.mxu0 0.0
    %427 = vmatpush.xpose.msra.mxu0 0.0
    %428 = vmatpush.xpose.msra.mxu0 0.0
    %429 = vmatpush.xpose.msra.mxu0 0.0
    %430 = vmatpush.xpose.msra.mxu0 0.0
    %431 = vmatpush.xpose.msra.mxu0 0.0
    %432 = vmatpush.xpose.msra.mxu0 0.0
    %433 = vmatpush.xpose.msra.mxu0 0.0
    %434 = vmatpush.xpose.msra.mxu0 0.0
    %435 = vmatpush.xpose.msra.mxu0 %v418
    %436 = vmatmul.f32.gmra.mxu0 %v415
    %v437 = vpop.f32.mrf.mxu0
    %v438 = vadd.f32 0.0, %v437
    %439 = vdwg.mxu0
    %v440 = vsel %vm414, %v410, 0
    %v443 = vsel %vm414, %v281, 0
    %445 = vmatpush.xpose.msra.mxu0 0.0
    %446 = vmatpush.xpose.msra.mxu0 0.0
    %447 = vmatpush.xpose.msra.mxu0 0.0
    %448 = vmatpush.xpose.msra.mxu0 0.0
    %449 = vmatpush.xpose.msra.mxu0 0.0
    %450 = vmatpush.xpose.msra.mxu0 0.0
    %451 = vmatpush.xpose.msra.mxu0 0.0
    %452 = vmatpush.xpose.msra.mxu0 0.0
    %453 = vmatpush.xpose.msra.mxu0 0.0
    %454 = vmatpush.xpose.msra.mxu0 0.0
    %455 = vmatpush.xpose.msra.mxu0 0.0
    %456 = vmatpush.xpose.msra.mxu0 0.0
    %457 = vmatpush.xpose.msra.mxu0 0.0
    %458 = vmatpush.xpose.msra.mxu0 0.0
    %459 = vmatpush.xpose.msra.mxu0 0.0
    %460 = vmatpush.xpose.msra.mxu0 %v443
    %461 = vmatmul.f32.gmra.mxu0 %v440
    %v462 = vpop.f32.mrf.mxu0
    %v463 = vadd.f32 0.0, %v462
    %464 = vdwg.mxu0
    %v465 = vsel %vm414, %v403, 0
    %v468 = vsel %vm414, %v282, 0
    %470 = vmatpush.xpose.msra.mxu0 0.0
    %471 = vmatpush.xpose.msra.mxu0 0.0
    %472 = vmatpush.xpose.msra.mxu0 0.0
    %473 = vmatpush.xpose.msra.mxu0 0.0
    %474 = vmatpush.xpose.msra.mxu0 0.0
    %475 = vmatpush.xpose.msra.mxu0 0.0
    %476 = vmatpush.xpose.msra.mxu0 0.0
    %477 = vmatpush.xpose.msra.mxu0 0.0
    %478 = vmatpush.xpose.msra.mxu0 0.0
    %479 = vmatpush.xpose.msra.mxu0 0.0
    %480 = vmatpush.xpose.msra.mxu0 0.0
    %481 = vmatpush.xpose.msra.mxu0 0.0
    %482 = vmatpush.xpose.msra.mxu0 0.0
    %483 = vmatpush.xpose.msra.mxu0 0.0
    %484 = vmatpush.xpose.msra.mxu0 0.0
    %485 = vmatpush.xpose.msra.mxu0 %v468
    %486 = vmatmul.f32.gmra.mxu0 %v465
    %v487 = vpop.f32.mrf.mxu0
    %v488 = vadd.f32 0.0, %v487
    %489 = vdwg.mxu0
    %v490 = vsel %vm414, %v411, 0
    %v493 = vsel %vm414, %v283, 0
    %495 = vmatpush.xpose.msra.mxu0 0.0
    %496 = vmatpush.xpose.msra.mxu0 0.0
    %497 = vmatpush.xpose.msra.mxu0 0.0
    %498 = vmatpush.xpose.msra.mxu0 0.0
    %499 = vmatpush.xpose.msra.mxu0 0.0
    %500 = vmatpush.xpose.msra.mxu0 0.0
    %501 = vmatpush.xpose.msra.mxu0 0.0
    %502 = vmatpush.xpose.msra.mxu0 0.0
    %503 = vmatpush.xpose.msra.mxu0 0.0
    %504 = vmatpush.xpose.msra.mxu0 0.0
    %505 = vmatpush.xpose.msra.mxu0 0.0
    %506 = vmatpush.xpose.msra.mxu0 0.0
    %507 = vmatpush.xpose.msra.mxu0 0.0
    %508 = vmatpush.xpose.msra.mxu0 0.0
    %509 = vmatpush.xpose.msra.mxu0 0.0
    %510 = vmatpush.xpose.msra.mxu0 %v493
    %511 = vmatmul.f32.gmra.mxu0 %v490
    %v512 = vpop.f32.mrf.mxu0
    %v513 = vadd.f32 0.0, %v512
    %514 = vdwg.mxu0
    %v515 = vsel %vm414, %v404, 0
    %v518 = vsel %vm414, %v284, 0
    %520 = vmatpush.xpose.msra.mxu0 0.0
    %521 = vmatpush.xpose.msra.mxu0 0.0
    %522 = vmatpush.xpose.msra.mxu0 0.0
    %523 = vmatpush.xpose.msra.mxu0 0.0
    %524 = vmatpush.xpose.msra.mxu0 0.0
    %525 = vmatpush.xpose.msra.mxu0 0.0
    %526 = vmatpush.xpose.msra.mxu0 0.0
    %527 = vmatpush.xpose.msra.mxu0 0.0
    %528 = vmatpush.xpose.msra.mxu0 0.0
    %529 = vmatpush.xpose.msra.mxu0 0.0
    %530 = vmatpush.xpose.msra.mxu0 0.0
    %531 = vmatpush.xpose.msra.mxu0 0.0
    %532 = vmatpush.xpose.msra.mxu0 0.0
    %533 = vmatpush.xpose.msra.mxu0 0.0
    %534 = vmatpush.xpose.msra.mxu0 0.0
    %535 = vmatpush.xpose.msra.mxu0 %v518
    %536 = vmatmul.f32.gmra.mxu0 %v515
    %v537 = vpop.f32.mrf.mxu0
    %v538 = vadd.f32 0.0, %v537
    %539 = vdwg.mxu0
    %v540 = vsel %vm414, %v412, 0
    %v543 = vsel %vm414, %v285, 0
    %545 = vmatpush.xpose.msra.mxu0 0.0
    %546 = vmatpush.xpose.msra.mxu0 0.0
    %547 = vmatpush.xpose.msra.mxu0 0.0
    %548 = vmatpush.xpose.msra.mxu0 0.0
    %549 = vmatpush.xpose.msra.mxu0 0.0
    %550 = vmatpush.xpose.msra.mxu0 0.0
    %551 = vmatpush.xpose.msra.mxu0 0.0
    %552 = vmatpush.xpose.msra.mxu0 0.0
    %553 = vmatpush.xpose.msra.mxu0 0.0
    %554 = vmatpush.xpose.msra.mxu0 0.0
    %555 = vmatpush.xpose.msra.mxu0 0.0
    %556 = vmatpush.xpose.msra.mxu0 0.0
    %557 = vmatpush.xpose.msra.mxu0 0.0
    %558 = vmatpush.xpose.msra.mxu0 0.0
    %559 = vmatpush.xpose.msra.mxu0 0.0
    %560 = vmatpush.xpose.msra.mxu0 %v543
    %561 = vmatmul.f32.gmra.mxu0 %v540
    %v562 = vpop.f32.mrf.mxu0
    %v563 = vadd.f32 0.0, %v562
    %564 = vdwg.mxu0
    %v565 = vsel %vm414, %v405, 0
    %v568 = vsel %vm414, %v286, 0
    %570 = vmatpush.xpose.msra.mxu0 0.0
    %571 = vmatpush.xpose.msra.mxu0 0.0
    %572 = vmatpush.xpose.msra.mxu0 0.0
    %573 = vmatpush.xpose.msra.mxu0 0.0
    %574 = vmatpush.xpose.msra.mxu0 0.0
    %575 = vmatpush.xpose.msra.mxu0 0.0
    %576 = vmatpush.xpose.msra.mxu0 0.0
    %577 = vmatpush.xpose.msra.mxu0 0.0
    %578 = vmatpush.xpose.msra.mxu0 0.0
    %579 = vmatpush.xpose.msra.mxu0 0.0
    %580 = vmatpush.xpose.msra.mxu0 0.0
    %581 = vmatpush.xpose.msra.mxu0 0.0
    %582 = vmatpush.xpose.msra.mxu0 0.0
    %583 = vmatpush.xpose.msra.mxu0 0.0
    %584 = vmatpush.xpose.msra.mxu0 0.0
    %585 = vmatpush.xpose.msra.mxu0 %v568
    %586 = vmatmul.f32.gmra.mxu0 %v565
    %v587 = vpop.f32.mrf.mxu0
    %v588 = vadd.f32 0.0, %v587
    %589 = vdwg.mxu0
    %v590 = vsel %vm414, %v413, 0
    %v593 = vsel %vm414, %v287, 0
    %595 = vmatpush.xpose.msra.mxu0 0.0
    %596 = vmatpush.xpose.msra.mxu0 0.0
    %597 = vmatpush.xpose.msra.mxu0 0.0
    %598 = vmatpush.xpose.msra.mxu0 0.0
    %599 = vmatpush.xpose.msra.mxu0 0.0
    %600 = vmatpush.xpose.msra.mxu0 0.0
    %601 = vmatpush.xpose.msra.mxu0 0.0
    %602 = vmatpush.xpose.msra.mxu0 0.0
    %603 = vmatpush.xpose.msra.mxu0 0.0
    %604 = vmatpush.xpose.msra.mxu0 0.0
    %605 = vmatpush.xpose.msra.mxu0 0.0
    %606 = vmatpush.xpose.msra.mxu0 0.0
    %607 = vmatpush.xpose.msra.mxu0 0.0
    %608 = vmatpush.xpose.msra.mxu0 0.0
    %609 = vmatpush.xpose.msra.mxu0 0.0
    %610 = vmatpush.xpose.msra.mxu0 %v593
    %611 = vmatmul.f32.gmra.mxu0 %v590
    %v612 = vpop.f32.mrf.mxu0
    %v613 = vadd.f32 0.0, %v612
    %614 = vdwg.mxu0
    %vm615 = vcmask 57344
    %v616 = vsel %vm615, %v438, -inf
    %617 = vmax.xlane.f32.xlu0 %v616
    %v618 = vpop.xlane.xlu0 %617
    %v619 = vsel %vm615, %v463, -inf
    %620 = vmax.xlane.f32.xlu0 %v619
    %v621 = vpop.xlane.xlu0 %620
    %v622 = vsel %vm615, %v488, -inf
    %623 = vmax.xlane.f32.xlu0 %v622
    %v624 = vpop.xlane.xlu0 %623
    %v625 = vsel %vm615, %v513, -inf
    %626 = vmax.xlane.f32.xlu0 %v625
    %v627 = vpop.xlane.xlu0 %626
    %v628 = vsel %vm615, %v538, -inf
    %629 = vmax.xlane.f32.xlu0 %v628
    %v630 = vpop.xlane.xlu0 %629
    %v631 = vsel %vm615, %v563, -inf
    %632 = vmax.xlane.f32.xlu0 %v631
    %v633 = vpop.xlane.xlu0 %632
    %v634 = vsel %vm615, %v588, -inf
    %635 = vmax.xlane.f32.xlu0 %v634
    %v636 = vpop.xlane.xlu0 %635
    %v637 = vsel %vm615, %v613, -inf
    %638 = vmax.xlane.f32.xlu0 %v637
    %v639 = vpop.xlane.xlu0 %638
    %v640 = vsub.f32 %v438, %v618
    %v641 = vsub.f32 %v463, %v621
    %v642 = vsub.f32 %v488, %v624
    %v643 = vsub.f32 %v513, %v627
    %v644 = vsub.f32 %v538, %v630
    %v645 = vsub.f32 %v563, %v633
    %v646 = vsub.f32 %v588, %v636
    %v647 = vsub.f32 %v613, %v639
    %v648 = vmul.f32 %v640, 1.442695
    %v649 = vpow.pop %v648
    %v650 = vmul.f32 %v641, 1.442695
    %v651 = vpow.pop %v650
    %v652 = vmul.f32 %v642, 1.442695
    %v653 = vpow.pop %v652
    %v654 = vmul.f32 %v643, 1.442695
    %v655 = vpow.pop %v654
    %v656 = vmul.f32 %v644, 1.442695
    %v657 = vpow.pop %v656
    %v658 = vmul.f32 %v645, 1.442695
    %v659 = vpow.pop %v658
    %v660 = vmul.f32 %v646, 1.442695
    %v661 = vpow.pop %v660
    %v662 = vmul.f32 %v647, 1.442695
    %v663 = vpow.pop %v662
    %v664 = vsel %vm615, %v649, 0.0
    %665 = vadd.xlane.f32.xlu0 %v664
    %v666 = vpop.xlane.xlu0 %665
    %v667 = vsel %vm615, %v651, 0.0
    %668 = vadd.xlane.f32.xlu0 %v667
    %v669 = vpop.xlane.xlu0 %668
    %v670 = vsel %vm615, %v653, 0.0
    %671 = vadd.xlane.f32.xlu0 %v670
    %v672 = vpop.xlane.xlu0 %671
    %v673 = vsel %vm615, %v655, 0.0
    %674 = vadd.xlane.f32.xlu0 %v673
    %v675 = vpop.xlane.xlu0 %674
    %v676 = vsel %vm615, %v657, 0.0
    %677 = vadd.xlane.f32.xlu0 %v676
    %v678 = vpop.xlane.xlu0 %677
    %v679 = vsel %vm615, %v659, 0.0
    %680 = vadd.xlane.f32.xlu0 %v679
    %v681 = vpop.xlane.xlu0 %680
    %v682 = vsel %vm615, %v661, 0.0
    %683 = vadd.xlane.f32.xlu0 %v682
    %v684 = vpop.xlane.xlu0 %683
    %v685 = vsel %vm615, %v663, 0.0
    %686 = vadd.xlane.f32.xlu0 %v685
    %v687 = vpop.xlane.xlu0 %686
    %v688 = vrcp.pop %v666
    %v689 = vmul.f32 %v666, %v688
    %v690 = vsub.f32 1.0, %v689
    %v691 = vmul.f32 %v688, %v690
    %v692 = vadd.f32 %v688, %v691
    %vm693 = vweird.f32 %v666
    %vm694 = vweird.f32 %v688
    %vm695 = vmor %vm693, %vm694
    %v696 = vsel %vm695, %v688, %v692
    %v697 = vand.u32 2147483647, %v666
    %vm698 = vcmp.eq.f32.partialorder %v697, 8.507059e+37
    %v699 = vand.u32 %v666, 2147483648
    %v700 = vor.u32 1.1754944e-38, %v699
    %v701 = vsel %vm698, %v700, %v696
    %v702 = vmul.f32 %v649, %v701
    %v703 = vrcp.pop %v669
    %v704 = vmul.f32 %v669, %v703
    %v705 = vsub.f32 1.0, %v704
    %v706 = vmul.f32 %v703, %v705
    %v707 = vadd.f32 %v703, %v706
    %vm708 = vweird.f32 %v669
    %vm709 = vweird.f32 %v703
    %vm710 = vmor %vm708, %vm709
    %v711 = vsel %vm710, %v703, %v707
    %v712 = vand.u32 2147483647, %v669
    %vm713 = vcmp.eq.f32.partialorder %v712, 8.507059e+37
    %v714 = vand.u32 %v669, 2147483648
    %v715 = vor.u32 1.1754944e-38, %v714
    %v716 = vsel %vm713, %v715, %v711
    %v717 = vmul.f32 %v651, %v716
    %v718 = vrcp.pop %v672
    %v719 = vmul.f32 %v672, %v718
    %v720 = vsub.f32 1.0, %v719
    %v721 = vmul.f32 %v718, %v720
    %v722 = vadd.f32 %v718, %v721
    %vm723 = vweird.f32 %v672
    %vm724 = vweird.f32 %v718
    %vm725 = vmor %vm723, %vm724
    %v726 = vsel %vm725, %v718, %v722
    %v727 = vand.u32 2147483647, %v672
    %vm728 = vcmp.eq.f32.partialorder %v727, 8.507059e+37
    %v729 = vand.u32 %v672, 2147483648
    %v730 = vor.u32 1.1754944e-38, %v729
    %v731 = vsel %vm728, %v730, %v726
    %v732 = vmul.f32 %v653, %v731
    %v733 = vrcp.pop %v675
    %v734 = vmul.f32 %v675, %v733
    %v735 = vsub.f32 1.0, %v734
    %v736 = vmul.f32 %v733, %v735
    %v737 = vadd.f32 %v733, %v736
    %vm738 = vweird.f32 %v675
    %vm739 = vweird.f32 %v733
    %vm740 = vmor %vm738, %vm739
    %v741 = vsel %vm740, %v733, %v737
    %v742 = vand.u32 2147483647, %v675
    %vm743 = vcmp.eq.f32.partialorder %v742, 8.507059e+37
    %v744 = vand.u32 %v675, 2147483648
    %v745 = vor.u32 1.1754944e-38, %v744
    %v746 = vsel %vm743, %v745, %v741
    %v747 = vmul.f32 %v655, %v746
    %v748 = vrcp.pop %v678
    %v749 = vmul.f32 %v678, %v748
    %v750 = vsub.f32 1.0, %v749
    %v751 = vmul.f32 %v748, %v750
    %v752 = vadd.f32 %v748, %v751
    %vm753 = vweird.f32 %v678
    %vm754 = vweird.f32 %v748
    %vm755 = vmor %vm753, %vm754
    %v756 = vsel %vm755, %v748, %v752
    %v757 = vand.u32 2147483647, %v678
    %vm758 = vcmp.eq.f32.partialorder %v757, 8.507059e+37
    %v759 = vand.u32 %v678, 2147483648
    %v760 = vor.u32 1.1754944e-38, %v759
    %v761 = vsel %vm758, %v760, %v756
    %v762 = vmul.f32 %v657, %v761
    %v763 = vrcp.pop %v681
    %v764 = vmul.f32 %v681, %v763
    %v765 = vsub.f32 1.0, %v764
    %v766 = vmul.f32 %v763, %v765
    %v767 = vadd.f32 %v763, %v766
    %vm768 = vweird.f32 %v681
    %vm769 = vweird.f32 %v763
    %vm770 = vmor %vm768, %vm769
    %v771 = vsel %vm770, %v763, %v767
    %v772 = vand.u32 2147483647, %v681
    %vm773 = vcmp.eq.f32.partialorder %v772, 8.507059e+37
    %v774 = vand.u32 %v681, 2147483648
    %v775 = vor.u32 1.1754944e-38, %v774
    %v776 = vsel %vm773, %v775, %v771
    %v777 = vmul.f32 %v659, %v776
    %v778 = vrcp.pop %v684
    %v779 = vmul.f32 %v684, %v778
    %v780 = vsub.f32 1.0, %v779
    %v781 = vmul.f32 %v778, %v780
    %v782 = vadd.f32 %v778, %v781
    %vm783 = vweird.f32 %v684
    %vm784 = vweird.f32 %v778
    %vm785 = vmor %vm783, %vm784
    %v786 = vsel %vm785, %v778, %v782
    %v787 = vand.u32 2147483647, %v684
    %vm788 = vcmp.eq.f32.partialorder %v787, 8.507059e+37
    %v789 = vand.u32 %v684, 2147483648
    %v790 = vor.u32 1.1754944e-38, %v789
    %v791 = vsel %vm788, %v790, %v786
    %v792 = vmul.f32 %v661, %v791
    %v793 = vrcp.pop %v687
    %v794 = vmul.f32 %v687, %v793
    %v795 = vsub.f32 1.0, %v794
    %v796 = vmul.f32 %v793, %v795
    %v797 = vadd.f32 %v793, %v796
    %vm798 = vweird.f32 %v687
    %vm799 = vweird.f32 %v793
    %vm800 = vmor %vm798, %vm799
    %v801 = vsel %vm800, %v793, %v797
    %v802 = vand.u32 2147483647, %v687
    %vm803 = vcmp.eq.f32.partialorder %v802, 8.507059e+37
    %v804 = vand.u32 %v687, 2147483648
    %v805 = vor.u32 1.1754944e-38, %v804
    %v806 = vsel %vm803, %v805, %v801
    %v807 = vmul.f32 %v663, %v806
    %vm808 = vcmask 64512
    %v810 = vsel %vm808, %v702, 0
    %812 = vmatpush.msra.mxu0 0.0
    %813 = vmatpush.msra.mxu0 0.0
    %814 = vmatpush.msra.mxu0 0.0
    %815 = vmatpush.msra.mxu0 0.0
    %816 = vmatpush.msra.mxu0 0.0
    %817 = vmatpush.msra.mxu0 0.0
    %818 = vmatpush.msra.mxu0 0.0
    %819 = vmatpush.msra.mxu0 0.0
    %820 = vmatpush.msra.mxu0 0.0
    %821 = vmatpush.msra.mxu0 0.0
    %822 = vmatpush.msra.mxu0 0.0
    %823 = vmatpush.msra.mxu0 0.0
    %824 = vmatpush.msra.mxu0 0.0
    %825 = vmatpush.msra.mxu0 0.0
    %826 = vmatpush.msra.mxu0 0.0
    %827 = vmatpush.msra.mxu0 %v288
    %828 = vmatmul.f32.gmra.mxu0 %v810
    %v829 = vpop.f32.mrf.mxu0
    %v830 = vadd.f32 0.0, %v829
    %831 = vdwg.mxu0
    %v833 = vsel %vm808, %v717, 0
    %835 = vmatpush.msra.mxu0 0.0
    %836 = vmatpush.msra.mxu0 0.0
    %837 = vmatpush.msra.mxu0 0.0
    %838 = vmatpush.msra.mxu0 0.0
    %839 = vmatpush.msra.mxu0 0.0
    %840 = vmatpush.msra.mxu0 0.0
    %841 = vmatpush.msra.mxu0 0.0
    %842 = vmatpush.msra.mxu0 0.0
    %843 = vmatpush.msra.mxu0 0.0
    %844 = vmatpush.msra.mxu0 0.0
    %845 = vmatpush.msra.mxu0 0.0
    %846 = vmatpush.msra.mxu0 0.0
    %847 = vmatpush.msra.mxu0 0.0
    %848 = vmatpush.msra.mxu0 0.0
    %849 = vmatpush.msra.mxu0 0.0
    %850 = vmatpush.msra.mxu0 %v289
    %851 = vmatmul.f32.gmra.mxu0 %v833
    %v852 = vpop.f32.mrf.mxu0
    %v853 = vadd.f32 0.0, %v852
    %854 = vdwg.mxu0
    %v856 = vsel %vm808, %v732, 0
    %858 = vmatpush.msra.mxu0 0.0
    %859 = vmatpush.msra.mxu0 0.0
    %860 = vmatpush.msra.mxu0 0.0
    %861 = vmatpush.msra.mxu0 0.0
    %862 = vmatpush.msra.mxu0 0.0
    %863 = vmatpush.msra.mxu0 0.0
    %864 = vmatpush.msra.mxu0 0.0
    %865 = vmatpush.msra.mxu0 0.0
    %866 = vmatpush.msra.mxu0 0.0
    %867 = vmatpush.msra.mxu0 0.0
    %868 = vmatpush.msra.mxu0 0.0
    %869 = vmatpush.msra.mxu0 0.0
    %870 = vmatpush.msra.mxu0 0.0
    %871 = vmatpush.msra.mxu0 0.0
    %872 = vmatpush.msra.mxu0 0.0
    %873 = vmatpush.msra.mxu0 %v290
    %874 = vmatmul.f32.gmra.mxu0 %v856
    %v875 = vpop.f32.mrf.mxu0
    %v876 = vadd.f32 0.0, %v875
    %877 = vdwg.mxu0
    %v879 = vsel %vm808, %v747, 0
    %881 = vmatpush.msra.mxu0 0.0
    %882 = vmatpush.msra.mxu0 0.0
    %883 = vmatpush.msra.mxu0 0.0
    %884 = vmatpush.msra.mxu0 0.0
    %885 = vmatpush.msra.mxu0 0.0
    %886 = vmatpush.msra.mxu0 0.0
    %887 = vmatpush.msra.mxu0 0.0
    %888 = vmatpush.msra.mxu0 0.0
    %889 = vmatpush.msra.mxu0 0.0
    %890 = vmatpush.msra.mxu0 0.0
    %891 = vmatpush.msra.mxu0 0.0
    %892 = vmatpush.msra.mxu0 0.0
    %893 = vmatpush.msra.mxu0 0.0
    %894 = vmatpush.msra.mxu0 0.0
    %895 = vmatpush.msra.mxu0 0.0
    %896 = vmatpush.msra.mxu0 %v291
    %897 = vmatmul.f32.gmra.mxu0 %v879
    %v898 = vpop.f32.mrf.mxu0
    %v899 = vadd.f32 0.0, %v898
    %900 = vdwg.mxu0
    %v902 = vsel %vm808, %v762, 0
    %904 = vmatpush.msra.mxu0 0.0
    %905 = vmatpush.msra.mxu0 0.0
    %906 = vmatpush.msra.mxu0 0.0
    %907 = vmatpush.msra.mxu0 0.0
    %908 = vmatpush.msra.mxu0 0.0
    %909 = vmatpush.msra.mxu0 0.0
    %910 = vmatpush.msra.mxu0 0.0
    %911 = vmatpush.msra.mxu0 0.0
    %912 = vmatpush.msra.mxu0 0.0
    %913 = vmatpush.msra.mxu0 0.0
    %914 = vmatpush.msra.mxu0 0.0
    %915 = vmatpush.msra.mxu0 0.0
    %916 = vmatpush.msra.mxu0 0.0
    %917 = vmatpush.msra.mxu0 0.0
    %918 = vmatpush.msra.mxu0 0.0
    %919 = vmatpush.msra.mxu0 %v292
    %920 = vmatmul.f32.gmra.mxu0 %v902
    %v921 = vpop.f32.mrf.mxu0
    %v922 = vadd.f32 0.0, %v921
    %923 = vdwg.mxu0
    %v925 = vsel %vm808, %v777, 0
    %927 = vmatpush.msra.mxu0 0.0
    %928 = vmatpush.msra.mxu0 0.0
    %929 = vmatpush.msra.mxu0 0.0
    %930 = vmatpush.msra.mxu0 0.0
    %931 = vmatpush.msra.mxu0 0.0
    %932 = vmatpush.msra.mxu0 0.0
    %933 = vmatpush.msra.mxu0 0.0
    %934 = vmatpush.msra.mxu0 0.0
    %935 = vmatpush.msra.mxu0 0.0
    %936 = vmatpush.msra.mxu0 0.0
    %937 = vmatpush.msra.mxu0 0.0
    %938 = vmatpush.msra.mxu0 0.0
    %939 = vmatpush.msra.mxu0 0.0
    %940 = vmatpush.msra.mxu0 0.0
    %941 = vmatpush.msra.mxu0 0.0
    %942 = vmatpush.msra.mxu0 %v293
    %943 = vmatmul.f32.gmra.mxu0 %v925
    %v944 = vpop.f32.mrf.mxu0
    %v945 = vadd.f32 0.0, %v944
    %946 = vdwg.mxu0
    %v948 = vsel %vm808, %v792, 0
    %950 = vmatpush.msra.mxu0 0.0
    %951 = vmatpush.msra.mxu0 0.0
    %952 = vmatpush.msra.mxu0 0.0
    %953 = vmatpush.msra.mxu0 0.0
    %954 = vmatpush.msra.mxu0 0.0
    %955 = vmatpush.msra.mxu0 0.0
    %956 = vmatpush.msra.mxu0 0.0
    %957 = vmatpush.msra.mxu0 0.0
    %958 = vmatpush.msra.mxu0 0.0
    %959 = vmatpush.msra.mxu0 0.0
    %960 = vmatpush.msra.mxu0 0.0
    %961 = vmatpush.msra.mxu0 0.0
    %962 = vmatpush.msra.mxu0 0.0
    %963 = vmatpush.msra.mxu0 0.0
    %964 = vmatpush.msra.mxu0 0.0
    %965 = vmatpush.msra.mxu0 %v294
    %966 = vmatmul.f32.gmra.mxu0 %v948
    %v967 = vpop.f32.mrf.mxu0
    %v968 = vadd.f32 0.0, %v967
    %969 = vdwg.mxu0
    %v971 = vsel %vm808, %v807, 0
    %973 = vmatpush.msra.mxu0 0.0
    %974 = vmatpush.msra.mxu0 0.0
    %975 = vmatpush.msra.mxu0 0.0
    %976 = vmatpush.msra.mxu0 0.0
    %977 = vmatpush.msra.mxu0 0.0
    %978 = vmatpush.msra.mxu0 0.0
    %979 = vmatpush.msra.mxu0 0.0
    %980 = vmatpush.msra.mxu0 0.0
    %981 = vmatpush.msra.mxu0 0.0
    %982 = vmatpush.msra.mxu0 0.0
    %983 = vmatpush.msra.mxu0 0.0
    %984 = vmatpush.msra.mxu0 0.0
    %985 = vmatpush.msra.mxu0 0.0
    %986 = vmatpush.msra.mxu0 0.0
    %987 = vmatpush.msra.mxu0 0.0
    %988 = vmatpush.msra.mxu0 %v295
    %989 = vmatmul.f32.gmra.mxu0 %v971
    %v990 = vpop.f32.mrf.mxu0
    %v991 = vadd.f32 0.0, %v990
    %992 = vdwg.mxu0
    %v993 = vld [vmem:[%s7] sm:$0xff]
    %v994 = vld [vmem:[%s7 + $0x8] sm:$0xff]
    %v995 = vld [vmem:[%s7 + $0x10] sm:$0xff]
    %v996 = vld [vmem:[%s7 + $0x18] sm:$0xff]
    %v997 = vld [vmem:[%s7 + $0x20] sm:$0xff]
    %v998 = vld [vmem:[%s7 + $0x28] sm:$0xff]
    %v999 = vld [vmem:[%s7 + $0x30] sm:$0xff]
    %v1000 = vld [vmem:[%s7 + $0x38] sm:$0xff]
    %v1003 = vrot.slane %v853, 7
    %vm1004 = vcmask 1041409
    %v1005 = vsel %vm1004, %v1003, %v830
    %v1006 = vsel %vm414, %v1005, 0
    %1008 = vmatpush.msra.mxu0 0.0
    %1009 = vmatpush.msra.mxu0 0.0
    %1010 = vmatpush.msra.mxu0 0.0
    %1011 = vmatpush.msra.mxu0 0.0
    %1012 = vmatpush.msra.mxu0 0.0
    %1013 = vmatpush.msra.mxu0 0.0
    %1014 = vmatpush.msra.mxu0 0.0
    %1015 = vmatpush.msra.mxu0 0.0
    %1016 = vmatpush.msra.mxu0 0.0
    %1017 = vmatpush.msra.mxu0 0.0
    %1018 = vmatpush.msra.mxu0 0.0
    %1019 = vmatpush.msra.mxu0 0.0
    %1020 = vmatpush.msra.mxu0 0.0
    %1021 = vmatpush.msra.mxu0 0.0
    %1022 = vmatpush.msra.mxu0 %v994
    %1023 = vmatpush.msra.mxu0 %v993
    %1024 = vmatmul.f32.gmra.mxu0 %v1006
    %v1025 = vpop.f32.mrf.mxu0
    %v1026 = vadd.f32 0.0, %v1025
    %1027 = vdwg.mxu0
    %v1030 = vrot.slane %v899, 7
    %v1031 = vsel %vm1004, %v1030, %v876
    %v1032 = vsel %vm414, %v1031, 0
    %1034 = vmatpush.msra.mxu0 0.0
    %1035 = vmatpush.msra.mxu0 0.0
    %1036 = vmatpush.msra.mxu0 0.0
    %1037 = vmatpush.msra.mxu0 0.0
    %1038 = vmatpush.msra.mxu0 0.0
    %1039 = vmatpush.msra.mxu0 0.0
    %1040 = vmatpush.msra.mxu0 0.0
    %1041 = vmatpush.msra.mxu0 0.0
    %1042 = vmatpush.msra.mxu0 0.0
    %1043 = vmatpush.msra.mxu0 0.0
    %1044 = vmatpush.msra.mxu0 0.0
    %1045 = vmatpush.msra.mxu0 0.0
    %1046 = vmatpush.msra.mxu0 0.0
    %1047 = vmatpush.msra.mxu0 0.0
    %1048 = vmatpush.msra.mxu0 %v996
    %1049 = vmatpush.msra.mxu0 %v995
    %1050 = vmatmul.f32.gmra.mxu0 %v1032
    %v1051 = vpop.f32.mrf.mxu0
    %v1052 = vadd.f32 0.0, %v1051
    %1053 = vdwg.mxu0
    %v1056 = vrot.slane %v945, 7
    %v1057 = vsel %vm1004, %v1056, %v922
    %v1058 = vsel %vm414, %v1057, 0
    %1060 = vmatpush.msra.mxu0 0.0
    %1061 = vmatpush.msra.mxu0 0.0
    %1062 = vmatpush.msra.mxu0 0.0
    %1063 = vmatpush.msra.mxu0 0.0
    %1064 = vmatpush.msra.mxu0 0.0
    %1065 = vmatpush.msra.mxu0 0.0
    %1066 = vmatpush.msra.mxu0 0.0
    %1067 = vmatpush.msra.mxu0 0.0
    %1068 = vmatpush.msra.mxu0 0.0
    %1069 = vmatpush.msra.mxu0 0.0
    %1070 = vmatpush.msra.mxu0 0.0
    %1071 = vmatpush.msra.mxu0 0.0
    %1072 = vmatpush.msra.mxu0 0.0
    %1073 = vmatpush.msra.mxu0 0.0
    %1074 = vmatpush.msra.mxu0 %v998
    %1075 = vmatpush.msra.mxu0 %v997
    %1076 = vmatmul.f32.gmra.mxu0 %v1058
    %v1077 = vpop.f32.mrf.mxu0
    %v1078 = vadd.f32 0.0, %v1077
    %1079 = vdwg.mxu0
    %v1082 = vrot.slane %v991, 7
    %v1083 = vsel %vm1004, %v1082, %v968
    %v1084 = vsel %vm414, %v1083, 0
    %1086 = vmatpush.msra.mxu0 0.0
    %1087 = vmatpush.msra.mxu0 0.0
    %1088 = vmatpush.msra.mxu0 0.0
    %1089 = vmatpush.msra.mxu0 0.0
    %1090 = vmatpush.msra.mxu0 0.0
    %1091 = vmatpush.msra.mxu0 0.0
    %1092 = vmatpush.msra.mxu0 0.0
    %1093 = vmatpush.msra.mxu0 0.0
    %1094 = vmatpush.msra.mxu0 0.0
    %1095 = vmatpush.msra.mxu0 0.0
    %1096 = vmatpush.msra.mxu0 0.0
    %1097 = vmatpush.msra.mxu0 0.0
    %1098 = vmatpush.msra.mxu0 0.0
    %1099 = vmatpush.msra.mxu0 0.0
    %1100 = vmatpush.msra.mxu0 %v1000
    %1101 = vmatpush.msra.mxu0 %v999
    %1102 = vmatmul.f32.gmra.mxu0 %v1084
    %v1103 = vpop.f32.mrf.mxu0
    %v1104 = vadd.f32 0.0, %v1103
    %1105 = vdwg.mxu0
    %vm1106 = vcmask 254976
    %v1107 = vsel %vm1106, %v1026, 0.0
    %v1108 = vsel %vm1106, %v1052, 0.0
    %v1109 = vadd.f32 %v1107, %v1108
    %v1110 = vsel %vm1106, %v1078, 0.0
    %v1111 = vadd.f32 %v1109, %v1110
    %v1112 = vsel %vm1106, %v1104, 0.0
    %v1113 = vadd.f32 %v1111, %v1112
    %v1114 = vld [vmem:[%s8] sm:$0x1]
    %v1116 = vperm.slane %v1114, 0
    %v1118 = vadd.f32 %v1113, %v1116
    %1119 = vst.msk [vmem:[#allocation2] sm:$0x3] %vm1106, %v1118
    // Predicated region
    $region38: #{tpu_custom_call.1} parent=1 // pred_check
      _
    $region39: #{tpu_custom_call.1} parent=1 // pred_check_branch
      %1121 = sbr.rel (0) target = $region41
    $region40: #{tpu_custom_call.1} parent=1 // pred_region
      %1123 = vsyncadd [#allocation3], 0
      %s1125 = sshll.u32 [#allocation2], 4
      %s1126 = int_to_ptr.vmem [resolvable:$true] %s1125
      %s1127 = sshll.u32 %s9, 4
      %s1128 = int_to_ptr.hbm [resolvable:$true] %s1127
      %1130 = dma.vmem_to_hbm [thread:$0]  %s1126, 32, %s1128, [#allocation3]
    $region41: #{tpu_custom_call.1} parent=1 // pred_fallthru
      _
    // Predicated region
    $region42: #{tpu_custom_call.1} parent=1 // pred_check
      _
    $region43: #{tpu_custom_call.1} parent=1 // pred_check_branch
      %1132 = sbr.rel (0) target = $region45
    $region44: #{tpu_custom_call.1} parent=1 // pred_region
      %1134 = dma.done [#allocation3], 32
    $region45: #{tpu_custom_call.1} parent=1 // pred_fallthru
      _
    %1135 = vsyncpa [#allocation3], 1

</llo_original>
